<compile_context>
chip_gen: v7x
topology: tpu7x:2x2x1
jax: 0.10.0
libtpu: 0.0.40
codegen_flags: <defaults>
</compile_context>

<pallas_src>
import functools

import jax
import jax.numpy as jnp
from jax import lax
from jax.experimental import pallas as pl
from jax.experimental.pallas import tpu as pltpu


# ----------------------------------------------------------------------------
# Tile / fold planning
# ----------------------------------------------------------------------------
def _plan_tiles(B, C, S, F, x_bytes, *, ts_pref, vmem_budget_bytes):
    """Choose (nb, tS, S_pad):
       nb    -- batch rows folded into one grid block (when S is small),
       tS    -- spatial tile (multiple of 128, or the full extent),
       S_pad -- padded spatial extent (== S unless padding+masking is needed)."""
    # Fold batch rows so that nb*S is at least ~256 rows of MXU work per step.
    if S >= 256:
        nb = 1
    else:
        want = -(-256 // S)  # ceil(256 / S)
        nb = max(d for d in range(1, B + 1) if B % d == 0 and d <= want)

    # Per-step VMEM bytes: x (double-buffered) + f32 y temp, per spatial elem.
    per_s = nb * (2 * C * x_bytes + 4 * F)
    fixed = 2 * (C * F + F) * x_bytes          # w + b (double-buffered)
    fixed += 2 * nb * 8 * F * 4                # sum/max slab accumulators
    fixed += 2 * nb * F * 4                    # pooled output block
    avail = max(vmem_budget_bytes - fixed, per_s * 128)
    ts_cap = max(128, (avail // per_s) // 128 * 128)
    ts_cap = min(ts_cap, max(128, (ts_pref // 128) * 128))

    if S <= ts_cap:                 # whole S in one tile (full-extent block)
        return nb, S, S
    if S % 128 == 0:                # MXU-aligned divisor, no padding needed
        t_s = max(t for t in range(128, ts_cap + 1, 128) if S % t == 0)
        return nb, t_s, S
    # Awkward S: pad up to a multiple of an aligned tile and mask in-kernel.
    t_s = ts_cap
    s_pad = -(-S // t_s) * t_s
    return nb, t_s, s_pad


# ----------------------------------------------------------------------------
# Kernel 1: fused "features" stand-in (1x1 conv + GELU) + global avg/max pool.
#   x:    [B, C, S_pad]   blocks (nb, C, tS)   (NCHW consumed directly)
#   w:    [C, F]          full block, index constant -> fetched once
#   b:    [1, F]          full block, index constant
#   out:  [B, 1, F] f32   blocks (nb, 1, F)    (pooled: mean + max over S)
# Grid: (B//nb, S_pad//tS); spatial axis is the innermost "arbitrary" reduction.
# ----------------------------------------------------------------------------
def fused_feat_pool_kernel(x_ref, w_ref, b_ref, o_ref, sum_acc, max_acc, *,
                           nb, slab, t_s, s_true, needs_mask):
    si = pl.program_id(1)
    f = o_ref.shape[-1]

    @pl.when(si == 0)
    def _():
        sum_acc[...] = jnp.zeros(sum_acc.shape, sum_acc.dtype)
        max_acc[...] = jnp.full(max_acc.shape, -jnp.inf, max_acc.dtype)

    w = w_ref[...]                                   # (C, F) bf16/f32 resident
    bias = b_ref[...].astype(jnp.float32)            # (1, F)

    if needs_mask:
        idx = lax.broadcasted_iota(jnp.int32, (t_s, 1), 0)
        valid = s_true - si * t_s                    # valid rows in this tile
        mask = idx < valid

    for r in range(nb):                              # static unroll (nb small)
        x_r = x_ref[r]                               # (C, tS)
        # Transposed-LHS matmul on the MXU: contract C (dim 0) with w dim 0;
        # bf16 inputs, f32 accumulation.
        y = lax.dot_general(x_r, w, (((0,), (0,)), ((), ())),
                            preferred_element_type=jnp.float32)   # (tS, F)
        y = y + bias
        y = jax.nn.gelu(y, approximate=True)         # f32 epilogue (EUP)

        if needs_mask:
            y_s = jnp.where(mask, y, 0.0)
            y_m = jnp.where(mask, y, -jnp.inf)
        else:
            y_s = y_m = y

        if slab == 8:
            # Collapse to an 8-sublane slab with pure VPU adds/maxes; the
            # cross-sublane 8->1 reduction is deferred to the finalize.
            part_sum = jnp.sum(y_s.reshape(t_s // 8, 8, f), axis=0)   # (8, F)
            part_max = jnp.max(y_m.reshape(t_s // 8, 8, f), axis=0)   # (8, F)
        else:
            part_sum = jnp.sum(y_s, axis=0, keepdims=True)            # (1, F)
            part_max = jnp.max(y_m, axis=0, keepdims=True)            # (1, F)

        sum_acc[r] = sum_acc[r] + part_sum
        max_acc[r] = jnp.maximum(max_acc[r], part_max)

    @pl.when(si == pl.num_programs(1) - 1)
    def _():
        inv_s = 1.0 / s_true
        pooled_sum = jnp.sum(sum_acc[...], axis=1)   # (nb, F)  one XLU collapse
        pooled_max = jnp.max(max_acc[...], axis=1)   # (nb, F)
        pooled = pooled_sum * inv_s + pooled_max     # avg + max
        o_ref[...] = pooled.reshape(nb, 1, f).astype(o_ref.dtype)


def features_and_pool(x_bcs, w, b, *, compute_dtype=jnp.bfloat16,
                      ts_pref=1024, vmem_budget_bytes=24 * 1024 * 1024):
    """pooled[B, F] = global_avgpool + global_maxpool of gelu(x @ w + b),
    consuming x in [B, C, S] (NCHW) layout, never materializing [B, S, F]."""
    B, C, S = x_bcs.shape
    C2, F = w.shape
    assert C2 == C, (C2, C)

    x = x_bcs.astype(compute_dtype)          # bf16 MXU inputs (f32 accumulate)
    wq = w.astype(compute_dtype)
    bq = b.astype(jnp.float32).reshape(1, F)
    x_bytes = jnp.dtype(compute_dtype).itemsize

    nb, t_s, s_pad = _plan_tiles(B, C, S, F, x_bytes,
                                 ts_pref=ts_pref,
                                 vmem_budget_bytes=vmem_budget_bytes)
    slab = 8 if t_s % 8 == 0 else 1
    needs_mask = s_pad != S
    if needs_mask:
        x = jnp.pad(x, ((0, 0), (0, 0), (0, s_pad - S)))
    n_s = s_pad // t_s

    kernel = functools.partial(fused_feat_pool_kernel, nb=nb, slab=slab,
                               t_s=t_s, s_true=S, needs_mask=needs_mask)

    out = pl.pallas_call(
        kernel,
        out_shape=jax.ShapeDtypeStruct((B, 1, F), jnp.float32),  # pooled kept f32
        grid_spec=pltpu.PrefetchScalarGridSpec(
            num_scalar_prefetch=0,
            grid=(B // nb, n_s),
            in_specs=[
                pl.BlockSpec((nb, C, t_s), lambda bi, si: (bi, 0, si)),
                # Full-F weight/bias blocks with constant index: fetched once,
                # stay resident across all batch/spatial steps.
                pl.BlockSpec((C, F), lambda bi, si: (0, 0)),
                pl.BlockSpec((1, F), lambda bi, si: (0, 0)),
            ],
            out_specs=pl.BlockSpec((nb, 1, F), lambda bi, si: (bi, 0, 0)),
            scratch_shapes=[
                pltpu.VMEM((nb, slab, F), jnp.float32),   # running sum slabs
                pltpu.VMEM((nb, slab, F), jnp.float32),   # running max slabs
            ],
        ),
        compiler_params=pltpu.CompilerParams(
            # batch-block axis shards across TensorCores; the spatial
            # reduction axis must stay "arbitrary".
            dimension_semantics=("parallel", "arbitrary"),
            # Safe on v7x (64 MiB physical); raise to 64-96 MiB on v6e and
            # grow the tile budget there if profiling warrants it.
            vmem_limit_bytes=32 * 1024 * 1024,
        ),
    )(x, wq, bq)
    return out.reshape(B, F)


# ----------------------------------------------------------------------------
# Kernel 2: BatchNorm1d (training mode: batch mean + biased batch variance)
# over the tiny pooled tensor [B, F].
# ----------------------------------------------------------------------------
def batchnorm1d_kernel(h_ref, gamma_ref, beta_ref, o_ref, *, eps):
    h = h_ref[...].astype(jnp.float32)                      # (B, F) f32 stats
    mu = jnp.mean(h, axis=0, keepdims=True)                 # (1, F)
    var = jnp.mean((h - mu) ** 2, axis=0, keepdims=True)    # biased variance
    inv = lax.rsqrt(var + eps)
    y = (h - mu) * inv * gamma_ref[...].astype(jnp.float32) \
        + beta_ref[...].astype(jnp.float32)
    o_ref[...] = y.astype(o_ref.dtype)


def batchnorm1d(h, gamma, beta, eps=1e-5):
    B, F = h.shape
    return pl.pallas_call(
        functools.partial(batchnorm1d_kernel, eps=eps),
        out_shape=jax.ShapeDtypeStruct((B, F), h.dtype),
        grid=(1,),
        in_specs=[
            pl.BlockSpec((B, F), lambda i: (0, 0)),
            pl.BlockSpec((1, F), lambda i: (0, 0)),
            pl.BlockSpec((1, F), lambda i: (0, 0)),
        ],
        out_specs=pl.BlockSpec((B, F), lambda i: (0, 0)),
        compiler_params=pltpu.CompilerParams(
            dimension_semantics=("arbitrary",),
            vmem_limit_bytes=32 * 1024 * 1024,
        ),
    )(h, gamma, beta)


# ----------------------------------------------------------------------------
# Full module forward
# ----------------------------------------------------------------------------
def convnext_reid_forward(x_nchw, params, *, compute_dtype=jnp.bfloat16,
                          ts_pref=1024):
    B, C, H, W = x_nchw.shape
    # NCHW consumed directly: only a free reshape, no HBM transpose pass.
    x_bcs = x_nchw.reshape(B, C, H * W)
    pooled = features_and_pool(x_bcs, params["w_feat"], params["b_feat"],
                               compute_dtype=compute_dtype,
                               ts_pref=ts_pref)             # [B, F] f32
    out = batchnorm1d(pooled, params["bn_gamma"], params["bn_beta"])
    return out                                              # [B, F] f32


def reference_forward(x_nchw, params, *, compute_dtype=jnp.bfloat16, eps=1e-5):
    B, C, H, W = x_nchw.shape
    xc = x_nchw.astype(compute_dtype).astype(jnp.float32)
    wc = params["w_feat"].astype(compute_dtype).astype(jnp.float32)
    x_bsc = jnp.transpose(xc, (0, 2, 3, 1)).reshape(B, H * W, C)
    y = jax.nn.gelu(x_bsc @ wc + params["b_feat"], approximate=True)
    h = jnp.mean(y, axis=1) + jnp.max(y, axis=1)
    mu = jnp.mean(h, axis=0, keepdims=True)
    var = jnp.mean((h - mu) ** 2, axis=0, keepdims=True)
    return (h - mu) / jnp.sqrt(var + eps) * params["bn_gamma"] + params["bn_beta"]


def _run_case(name, key, *, B, C, H, W, F, ts_pref):
    k_x, k_w, k_b, k_g = jax.random.split(key, 4)
    x = jax.random.normal(k_x, (B, C, H, W), dtype=jnp.float32)
    params = {
        "w_feat": jax.random.normal(k_w, (C, F), jnp.float32) * 0.1,
        "b_feat": jax.random.normal(k_b, (1, F), jnp.float32) * 0.01,
        # BatchNorm1d affine (PyTorch default weight=1, bias=0); perturb gamma
        # deterministically so the affine path is exercised.
        "bn_gamma": 1.0 + 0.1 * jax.random.normal(k_g, (1, F), jnp.float32),
        "bn_beta": jnp.zeros((1, F), jnp.float32),
    }
    out = jax.block_until_ready(convnext_reid_forward(x, params, ts_pref=ts_pref))
    ref = jax.block_until_ready(reference_forward(x, params))
    assert out.shape == (B, F), (name, out.shape)
    assert jnp.allclose(out, ref, atol=2e-3, rtol=2e-3), f"{name}: mismatch vs reference"


if __name__ == "__main__":
    key = jax.random.PRNGKey(0)
    k1, k2, k3 = jax.random.split(key, 3)

    # Case 1: S=256 -> two 128-row spatial tiles (exercises the accumulator
    # init/finalize across the "arbitrary" reduction axis), nb=1.
    _run_case("multi-step-reduction", k1, B=2, C=8, H=16, W=16, F=128, ts_pref=128)

    # Case 2: tiny S=16 -> batch rows folded (nb=B=4) into one block, single
    # spatial tile, slab accumulation path.
    _run_case("batch-fold", k2, B=4, C=8, H=4, W=4, F=128, ts_pref=1024)

    # Case 3: S=144 (not a multiple of 128) -> padded to 256 with in-kernel
    # masking of the padded rows, plus batch folding (nb=2).
    _run_case("padded-mask", k3, B=2, C=8, H=12, W=12, F=128, ts_pref=128)

    print("KERNEL_OK")
</pallas_src>

<mosaic_0001>
module attributes {stable_mosaic.version = 11 : i64} {
  func.func @fused_feat_pool_kernel(%arg0: i32, %arg1: i32, %arg2: memref<1x8x128xbf16, #tpu.memory_space<vmem>>, %arg3: memref<8x128xbf16, #tpu.memory_space<vmem>>, %arg4: memref<1x128xf32, #tpu.memory_space<vmem>>, %arg5: memref<1x1x128xf32, #tpu.memory_space<vmem>>, %arg6: memref<1x8x128xf32, #tpu.memory_space<vmem>>, %arg7: memref<1x8x128xf32, #tpu.memory_space<vmem>>) attributes {dimension_semantics = [#tpu.dimension_semantics<parallel>, #tpu.dimension_semantics<arbitrary>], iteration_bounds = array<i64: 2, 2>, scalar_prefetch = 0 : i64, scratch_operands = 2 : i64, tpu.core_type = #tpu.core_type<tc>, window_params = [{transform_indices = @transform_0, window_bounds = array<i64: 1, 8, 128>}, {pipeline_mode = #tpu.pipeline_mode<synchronous>, transform_indices = @transform_1, window_bounds = array<i64: 8, 128>}, {pipeline_mode = #tpu.pipeline_mode<synchronous>, transform_indices = @transform_2, window_bounds = array<i64: 1, 128>}, {transform_indices = @transform_3, window_bounds = array<i64: 1, 1, 128>}]} {
    %c0_i32 = arith.constant 0 : i32
    %0 = arith.cmpi eq, %arg1, %c0_i32 : i32
    %1 = arith.extui %0 : i1 to i32
    %c0_i32_0 = arith.constant 0 : i32
    %2 = arith.cmpi ne, %1, %c0_i32_0 : i32
    scf.if %2 {
      %cst_26 = arith.constant 0.000000e+00 : f32
      %42 = vector.broadcast %cst_26 : f32 to vector<1x8x128xf32>
      %c0_27 = arith.constant 0 : index
      %c0_28 = arith.constant 0 : index
      %c0_29 = arith.constant 0 : index
      %43 = vector.load %arg6[%c0_27, %c0_28, %c0_29] : memref<1x8x128xf32, #tpu.memory_space<vmem>>, vector<1x8x128xf32>
      tpu.vector_store %arg6[%c0_27, %c0_28, %c0_29], %42 {strides = array<i32>} : memref<1x8x128xf32, #tpu.memory_space<vmem>>, vector<1x8x128xf32>,
      %cst_30 = arith.constant 0xFF800000 : f32
      %44 = vector.broadcast %cst_30 : f32 to vector<1x8x128xf32>
      %c0_31 = arith.constant 0 : index
      %c0_32 = arith.constant 0 : index
      %c0_33 = arith.constant 0 : index
      %45 = vector.load %arg7[%c0_31, %c0_32, %c0_33] : memref<1x8x128xf32, #tpu.memory_space<vmem>>, vector<1x8x128xf32>
      tpu.vector_store %arg7[%c0_31, %c0_32, %c0_33], %44 {strides = array<i32>} : memref<1x8x128xf32, #tpu.memory_space<vmem>>, vector<1x8x128xf32>,
    } else {
    }
    %c0 = arith.constant 0 : index
    %c0_1 = arith.constant 0 : index
    %3 = vector.load %arg3[%c0, %c0_1] : memref<8x128xbf16, #tpu.memory_space<vmem>>, vector<8x128xbf16>
    %c0_2 = arith.constant 0 : index
    %c0_3 = arith.constant 0 : index
    %4 = vector.load %arg4[%c0_2, %c0_3] : memref<1x128xf32, #tpu.memory_space<vmem>>, vector<1x128xf32>
    %c0_4 = arith.constant 0 : index
    %c0_5 = arith.constant 0 : index
    %c0_6 = arith.constant 0 : index
    %5 = vector.load %arg2[%c0_4, %c0_5, %c0_6] : memref<1x8x128xbf16, #tpu.memory_space<vmem>>, vector<1x8x128xbf16>
    %6 = vector.shape_cast %5 : vector<1x8x128xbf16> to vector<8x128xbf16>
    %cst = arith.constant dense<0.000000e+00> : vector<128x128xf32>
    %7 = tpu.matmul %6, %3, %cst {dimension_numbers = #tpu.dot_dimension_numbers<[0], [0], [1], [1], [0, 1, 1, 1], [], []>} : vector<8x128xbf16>, vector<8x128xbf16>, vector<128x128xf32> -> vector<128x128xf32>
    %8 = vector.broadcast %4 : vector<1x128xf32> to vector<128x128xf32>
    %9 = arith.addf %7, %8 : vector<128x128xf32>
    %10 = arith.mulf %9, %9 : vector<128x128xf32>
    %11 = arith.mulf %9, %10 : vector<128x128xf32>
    %cst_7 = arith.constant 4.471500e-02 : f32
    %12 = vector.broadcast %cst_7 : f32 to vector<128x128xf32>
    %13 = arith.mulf %12, %11 : vector<128x128xf32>
    %14 = arith.addf %9, %13 : vector<128x128xf32>
    %cst_8 = arith.constant 0.797884583 : f32
    %15 = vector.broadcast %cst_8 : f32 to vector<128x128xf32>
    %16 = arith.mulf %15, %14 : vector<128x128xf32>
    %17 = math.tanh %16 : vector<128x128xf32>
    %cst_9 = arith.constant 1.000000e+00 : f32
    %18 = vector.broadcast %cst_9 : f32 to vector<128x128xf32>
    %19 = arith.addf %18, %17 : vector<128x128xf32>
    %cst_10 = arith.constant 5.000000e-01 : f32
    %20 = vector.broadcast %cst_10 : f32 to vector<128x128xf32>
    %21 = arith.mulf %20, %19 : vector<128x128xf32>
    %22 = arith.mulf %9, %21 : vector<128x128xf32>
    %23 = vector.shape_cast %22 : vector<128x128xf32> to vector<16x8x128xf32>
    %cst_11 = arith.constant dense<0.000000e+00> : vector<8x128xf32>
    %24 = vector.multi_reduction <add>, %23, %cst_11 [0] : vector<16x8x128xf32> to vector<8x128xf32>
    %25 = vector.shape_cast %22 : vector<128x128xf32> to vector<16x8x128xf32>
    %cst_12 = arith.constant dense<0xFF800000> : vector<8x128xf32>
    %26 = vector.multi_reduction <maximumf>, %25, %cst_12 [0] : vector<16x8x128xf32> to vector<8x128xf32>
    %c0_13 = arith.constant 0 : index
    %c0_14 = arith.constant 0 : index
    %c0_15 = arith.constant 0 : index
    %27 = vector.load %arg6[%c0_13, %c0_14, %c0_15] : memref<1x8x128xf32, #tpu.memory_space<vmem>>, vector<1x8x128xf32>
    %28 = vector.shape_cast %27 : vector<1x8x128xf32> to vector<8x128xf32>
    %29 = arith.addf %28, %24 : vector<8x128xf32>
    %c0_16 = arith.constant 0 : index
    %c0_17 = arith.constant 0 : index
    %c0_18 = arith.constant 0 : index
    %30 = vector.load %arg6[%c0_16, %c0_17, %c0_18] : memref<1x8x128xf32, #tpu.memory_space<vmem>>, vector<1x8x128xf32>
    %31 = vector.shape_cast %30 : vector<1x8x128xf32> to vector<8x128xf32>
    %32 = vector.shape_cast %29 : vector<8x128xf32> to vector<1x8x128xf32>
    tpu.vector_store %arg6[%c0_16, %c0_17, %c0_18], %32 {strides = array<i32>} : memref<1x8x128xf32, #tpu.memory_space<vmem>>, vector<1x8x128xf32>,
    %c0_19 = arith.constant 0 : index
    %c0_20 = arith.constant 0 : index
    %c0_21 = arith.constant 0 : index
    %33 = vector.load %arg7[%c0_19, %c0_20, %c0_21] : memref<1x8x128xf32, #tpu.memory_space<vmem>>, vector<1x8x128xf32>
    %34 = vector.shape_cast %33 : vector<1x8x128xf32> to vector<8x128xf32>
    %35 = arith.maximumf %34, %26 : vector<8x128xf32>
    %c0_22 = arith.constant 0 : index
    %c0_23 = arith.constant 0 : index
    %c0_24 = arith.constant 0 : index
    %36 = vector.load %arg7[%c0_22, %c0_23, %c0_24] : memref<1x8x128xf32, #tpu.memory_space<vmem>>, vector<1x8x128xf32>
    %37 = vector.shape_cast %36 : vector<1x8x128xf32> to vector<8x128xf32>
    %38 = vector.shape_cast %35 : vector<8x128xf32> to vector<1x8x128xf32>
    tpu.vector_store %arg7[%c0_22, %c0_23, %c0_24], %38 {strides = array<i32>} : memref<1x8x128xf32, #tpu.memory_space<vmem>>, vector<1x8x128xf32>,
    %c1_i32 = arith.constant 1 : i32
    %39 = arith.cmpi eq, %arg1, %c1_i32 : i32
    %40 = arith.extui %39 : i1 to i32
    %c0_i32_25 = arith.constant 0 : i32
    %41 = arith.cmpi ne, %40, %c0_i32_25 : i32
    scf.if %41 {
      %c0_26 = arith.constant 0 : index
      %c0_27 = arith.constant 0 : index
      %c0_28 = arith.constant 0 : index
      %42 = vector.load %arg6[%c0_26, %c0_27, %c0_28] : memref<1x8x128xf32, #tpu.memory_space<vmem>>, vector<1x8x128xf32>
      %cst_29 = arith.constant dense<0.000000e+00> : vector<1x128xf32>
      %43 = vector.multi_reduction <add>, %42, %cst_29 [1] : vector<1x8x128xf32> to vector<1x128xf32>
      %c0_30 = arith.constant 0 : index
      %c0_31 = arith.constant 0 : index
      %c0_32 = arith.constant 0 : index
      %44 = vector.load %arg7[%c0_30, %c0_31, %c0_32] : memref<1x8x128xf32, #tpu.memory_space<vmem>>, vector<1x8x128xf32>
      %cst_33 = arith.constant dense<0xFF800000> : vector<1x128xf32>
      %45 = vector.multi_reduction <maximumf>, %44, %cst_33 [1] : vector<1x8x128xf32> to vector<1x128xf32>
      %cst_34 = arith.constant 3.906250e-03 : f32
      %46 = vector.broadcast %cst_34 : f32 to vector<1x128xf32>
      %47 = arith.mulf %43, %46 : vector<1x128xf32>
      %48 = arith.addf %47, %45 : vector<1x128xf32>
      %49 = vector.shape_cast %48 : vector<1x128xf32> to vector<1x1x128xf32>
      %c0_35 = arith.constant 0 : index
      %c0_36 = arith.constant 0 : index
      %c0_37 = arith.constant 0 : index
      %50 = vector.load %arg5[%c0_35, %c0_36, %c0_37] : memref<1x1x128xf32, #tpu.memory_space<vmem>>, vector<1x1x128xf32>
      tpu.vector_store %arg5[%c0_35, %c0_36, %c0_37], %49 {strides = array<i32>} : memref<1x1x128xf32, #tpu.memory_space<vmem>>, vector<1x1x128xf32>,
    } else {
    }
    return
  }
  func.func @transform_0(%arg0: i32, %arg1: i32) -> (i32, i32, i32) {
    %c0_i32 = arith.constant 0 : i32
    %c0_i32_0 = arith.constant 0 : i32
    return %arg0, %c0_i32, %arg1 : i32, i32, i32
  }
  func.func @transform_1(%arg0: i32, %arg1: i32) -> (i32, i32) {
    %c0_i32 = arith.constant 0 : i32
    %c0_i32_0 = arith.constant 0 : i32
    %c0_i32_1 = arith.constant 0 : i32
    return %c0_i32, %c0_i32_0 : i32, i32
  }
  func.func @transform_2(%arg0: i32, %arg1: i32) -> (i32, i32) {
    %c0_i32 = arith.constant 0 : i32
    %c0_i32_0 = arith.constant 0 : i32
    %c0_i32_1 = arith.constant 0 : i32
    return %c0_i32, %c0_i32_0 : i32, i32
  }
  func.func @transform_3(%arg0: i32, %arg1: i32) -> (i32, i32, i32) {
    %c0_i32 = arith.constant 0 : i32
    %c0_i32_0 = arith.constant 0 : i32
    %c0_i32_1 = arith.constant 0 : i32
    return %arg0, %c0_i32, %c0_i32_0 : i32, i32, i32
  }
}

</mosaic_0001>

<llo_original>
// kernel: tpu_custom_call.1
$region0: #{tpu_custom_call.1}
  #allocation0 [shape = 'u32[]', space=smem, size = 0x4, offset = 0x4, fixed_abs, tag = 'smem constant byte address 0x4 - core index']
  #allocation1 [shape = 'u32[144,128]{1,0:T(1,128)}', space=vmem, size = 0x12000, scoped, tag = 'internal scratch']
  #allocation2 [shape = 'f32[1,8,128]{2,1,0:T(8,128)}', space=vmem, size = 0x1000, scoped, tag = 'scratch operand']
  #allocation3 [shape = 'f32[1,8,128]{2,1,0:T(8,128)}', space=vmem, size = 0x1000, scoped, tag = 'scratch operand']
  %s0 = inlined_call_operand.hbm [shape: bf16[2,8,256], index: 0, kind: input, shape index: {}]
  %s1 = inlined_call_operand.hbm [shape: bf16[8,128], index: 1, kind: input, shape index: {}]
  %s2 = inlined_call_operand.vmem [shape: f32[1,128], index: 2, kind: input, shape index: {}]
  %s3 = inlined_call_operand.hbm [shape: f32[2,1,128], index: 3, kind: output, shape index: {}]
  %s4 = sld [smem:[#allocation0]]
  $region61: #{tpu_custom_call.1} parent=0
    _
  %s6 = ssub.s32 1, %s4
  %s7 = scalar_select 0, %s6, %s4
  $region1: #{tpu_custom_call.1} parent=0
    #allocation4 [shape = 'u8[4096]{0}', space=vmem, size = 0x1000, scoped, tag = 'input window, operand 0']
    #allocation5 [shape = 's32[2]{0}', space=sflag, size = 0x8, scoped, tag = 'scoped memory for tpu_custom_call.1']
    #allocation6 [shape = 's32[2]{0}', space=sflag, size = 0x8, scoped, tag = 'scoped memory for tpu_custom_call.1']
    #allocation7 [shape = 'u8[2048]{0}', space=vmem, size = 0x800, scoped, tag = 'input window, operand 1, single buffered']
    #allocation8 [shape = 's32[1]{0}', space=sflag, size = 0x4, scoped, tag = 'scoped memory for tpu_custom_call.1']
    #allocation9 [shape = 'u8[1024]{0}', space=vmem, size = 0x400, scoped, tag = 'output window, operand 0']
    %8 = vsyncpa [#allocation5], 0
    %s9 = scalar_lea.sflag [#allocation5], 1
    %10 = vsyncpa %s9, 0
    %11 = vsyncpa [#allocation8], 0
    %12 = vsyncpa [#allocation6], 0
    %s13 = scalar_lea.sflag [#allocation6], 1
    %14 = vsyncpa %s13, 0
    loop: start=0, step=1, limit=6
    $region2: #{tpu_custom_call.1} parent=1 // loop_pre_header
      _
    $region3: #{tpu_custom_call.1} parent=1 // loop_header
      %s16 = sphi 0, %s20
      %p17 = scmp.ge.s32.totalorder %s16, 6
      %s23 = sphi 0, %s35
      %s24 = sphi 0, %s31
      %s25 = sphi 0, %s23
      %s26 = sphi 0, %s24
      %s27 = sphi 0, %s25
      %s28 = sphi 0, %s26
      %s40 = sphi 0, %s42
      %s43 = sphi 0, %s40
      %s44 = sphi 0, %s43
      %s60 = sphi 0, %s44
      %s64 = sphi 0, %s64
      %s66 = sphi 0, %s64
      %s67 = sphi 0, %s66
      %s81 = sphi 0, %s67
      %s85 = sphi 0, %s85
      %s87 = sphi 0, %s85
      %s88 = sphi 0, %s87
      %s102 = sphi 0, %s88
      %s108 = sphi 0, %s110
      %s111 = sphi 0, %s108
      %s112 = sphi 0, %s111
      %s128 = sphi 0, %s112
    $region4: #{tpu_custom_call.1} parent=1 // loop_header_branch
      %19 = sbr.rel (%p17) target = $region8
    $region5: #{tpu_custom_call.1} parent=1 // loop_body
      %s21 = ssub.s32 %s16, 1
      %s22 = ssub.s32 %s16, 2
      %s29 = sadd.s32 1, %s24
      %p30 = scmp.ge.s32.totalorder %s29, 2
      %s31 = scalar_select %p30, 0, %s29
      %s32 = sadd.s32 1, %s23
      %s33 = scalar_select %p30, %s32, %s23
      %p34 = scmp.ge.s32.totalorder %s33, 2
      %s35 = scalar_select %p34, 0, %s33
      %s36 = ssub.s32 %s23, %s35
      %s37 = ssub.s32 %s24, %s31
      %s38 = sor.u32 %s36, %s37
      %p39 = scmp.eq.s32.totalorder %s38, 0
      %s41 = sadd.s32 %s40, 1
      %s42 = scalar_select %p39, %s40, %s41
      %p45 = pneg %p39
      %p46 = scmp.eq.s32.totalorder %s16, 3
      %p47 = por %p45, %p46
      %p48 = scmp.ne.s32.totalorder %s40, %s43
      %p49 = scmp.eq.s32.totalorder %s16, 0
      %p50 = por %p48, %p49
      %p51 = scmp.ne.s32.totalorder %s40, %s43
      %p52 = scmp.eq.s32.totalorder %s21, 3
      %p53 = por %p51, %p52
      %p54 = scmp.ne.s32.totalorder %s43, %s44
      %p55 = scmp.eq.s32.totalorder %s21, 0
      %p56 = por %p54, %p55
      %p57 = scmp.ne.s32.totalorder %s43, %s44
      %p58 = scmp.eq.s32.totalorder %s22, 3
      %p59 = por %p57, %p58
      %p61 = scmp.ne.s32.totalorder %s44, %s60
      %p62 = scmp.eq.s32.totalorder %s22, 0
      %p63 = por %p61, %p62
      %s65 = sadd.s32 %s64, 1
      %p68 = scmp.eq.s32.totalorder %s16, 3
      %p69 = scmp.ne.s32.totalorder %s64, %s66
      %p70 = scmp.eq.s32.totalorder %s16, 0
      %p71 = por %p69, %p70
      %p72 = scmp.ne.s32.totalorder %s64, %s66
      %p73 = scmp.eq.s32.totalorder %s21, 3
      %p74 = por %p72, %p73
      %p75 = scmp.ne.s32.totalorder %s66, %s67
      %p76 = scmp.eq.s32.totalorder %s21, 0
      %p77 = por %p75, %p76
      %p78 = scmp.ne.s32.totalorder %s66, %s67
      %p79 = scmp.eq.s32.totalorder %s22, 3
      %p80 = por %p78, %p79
      %p82 = scmp.ne.s32.totalorder %s67, %s81
      %p83 = scmp.eq.s32.totalorder %s22, 0
      %p84 = por %p82, %p83
      %s86 = sadd.s32 %s85, 1
      %p89 = scmp.eq.s32.totalorder %s16, 3
      %p90 = scmp.ne.s32.totalorder %s85, %s87
      %p91 = scmp.eq.s32.totalorder %s16, 0
      %p92 = por %p90, %p91
      %p93 = scmp.ne.s32.totalorder %s85, %s87
      %p94 = scmp.eq.s32.totalorder %s21, 3
      %p95 = por %p93, %p94
      %p96 = scmp.ne.s32.totalorder %s87, %s88
      %p97 = scmp.eq.s32.totalorder %s21, 0
      %p98 = por %p96, %p97
      %p99 = scmp.ne.s32.totalorder %s87, %s88
      %p100 = scmp.eq.s32.totalorder %s22, 3
      %p101 = por %p99, %p100
      %p103 = scmp.ne.s32.totalorder %s88, %s102
      %p104 = scmp.eq.s32.totalorder %s22, 0
      %p105 = por %p103, %p104
      %s106 = ssub.s32 %s23, %s35
      %p107 = scmp.eq.s32.totalorder %s106, 0
      %s109 = sadd.s32 %s108, 1
      %s110 = scalar_select %p107, %s108, %s109
      %p113 = pneg %p107
      %p114 = scmp.eq.s32.totalorder %s16, 3
      %p115 = por %p113, %p114
      %p116 = scmp.ne.s32.totalorder %s108, %s111
      %p117 = scmp.eq.s32.totalorder %s16, 0
      %p118 = por %p116, %p117
      %p119 = scmp.ne.s32.totalorder %s108, %s111
      %p120 = scmp.eq.s32.totalorder %s21, 3
      %p121 = por %p119, %p120
      %p122 = scmp.ne.s32.totalorder %s111, %s112
      %p123 = scmp.eq.s32.totalorder %s21, 0
      %p124 = por %p122, %p123
      %p125 = scmp.ne.s32.totalorder %s111, %s112
      %p126 = scmp.eq.s32.totalorder %s22, 3
      %p127 = por %p125, %p126
      %p129 = scmp.ne.s32.totalorder %s112, %s128
      %p130 = scmp.eq.s32.totalorder %s22, 0
      %p131 = por %p129, %p130
      %p132 = scmp.le.s32.totalorder 1, %s16
      %p133 = scmp.lt.s32.totalorder %s16, 5
      %p134 = pnand %p132, %p133
      %p135 = pneg %p134
      // Predicated region
      $region9: #{tpu_custom_call.1} parent=5 // pred_check
        _
      $region10: #{tpu_custom_call.1} parent=5 // pred_check_branch
        %137 = sbr.rel (%p134) target = $region12
      $region11: #{tpu_custom_call.1} parent=5 // pred_region
        %s138 = ssub.s32 %s16, 1
        // Predicated region
        $region13: #{tpu_custom_call.1} parent=11 // pred_check
          %p139 = pneg %p77
        $region14: #{tpu_custom_call.1} parent=11 // pred_check_branch
          %141 = sbr.rel (%p139) target = $region16
        $region15: #{tpu_custom_call.1} parent=11 // pred_region
          %s143 = ssub.s32 64, 64
          %144 = vsyncadd [#allocation8], %s143
          %s146 = sshll.u32 [#allocation7], 4
          %s147 = int_to_ptr.vmem [resolvable:$true] %s146
          %149 = dma.hbm_to_vmem [thread:$0]  %s1, 64, %s147, [#allocation8]
        $region16: #{tpu_custom_call.1} parent=11 // pred_fallthru
          _
        // Predicated region
        $region17: #{tpu_custom_call.1} parent=11 // pred_check
          %p150 = pneg %p98
        $region18: #{tpu_custom_call.1} parent=11 // pred_check_branch
          %152 = sbr.rel (%p150) target = $region20
        $region19: #{tpu_custom_call.1} parent=11 // pred_region
          _
        $region20: #{tpu_custom_call.1} parent=11 // pred_fallthru
          _
      $region12: #{tpu_custom_call.1} parent=5 // pred_fallthru
        _
      %p153 = scmp.lt.s32.totalorder %s16, 4
      // Predicated region
      $region21: #{tpu_custom_call.1} parent=5 // pred_check
        %p154 = pneg %p153
      $region22: #{tpu_custom_call.1} parent=5 // pred_check_branch
        %156 = sbr.rel (%p154) target = $region24
      $region23: #{tpu_custom_call.1} parent=5 // pred_region
        // Predicated region
        $region25: #{tpu_custom_call.1} parent=23 // pred_check
          %p157 = pneg %p50
        $region26: #{tpu_custom_call.1} parent=23 // pred_check_branch
          %159 = sbr.rel (%p157) target = $region28
        $region27: #{tpu_custom_call.1} parent=23 // pred_region
          %s160 = sand.u32 %s40, 1
          %s161 = scalar_lea.sflag [#allocation5], %s160
          %s162 = sand.u32 %s40, 1
          %s163 = smul.addr %s162, 4
          %s164 = scalar_lea.vmem [#allocation4], %s163
          %s166 = ssub.s32 64, 64
          %167 = vsyncadd %s161, %s166
          %s168 = smul.addr %s23, 2
          %s169 = sadd.s32 %s24, %s168
          %s170 = smul.addr %s169, 64
          %s171 = scalar_lea.hbm %s0, %s170
          %s173 = sshll.u32 %s164, 4
          %s174 = int_to_ptr.vmem [resolvable:$true] %s173
          %176 = dma.hbm_to_vmem [thread:$0]  %s171, 64, %s174, %s161
        $region28: #{tpu_custom_call.1} parent=23 // pred_fallthru
          _
      $region24: #{tpu_custom_call.1} parent=5 // pred_fallthru
        _
      %p177 = scmp.le.s32.totalorder 1, %s16
      %p178 = scmp.lt.s32.totalorder %s16, 5
      %p179 = pnand %p177, %p178
      %p180 = pneg %p179
      // Predicated region
      $region29: #{tpu_custom_call.1} parent=5 // pred_check
        _
      $region30: #{tpu_custom_call.1} parent=5 // pred_check_branch
        %182 = sbr.rel (%p179) target = $region32
      $region31: #{tpu_custom_call.1} parent=5 // pred_region
        %s183 = ssub.s32 %s16, 1
        %s184 = sand.u32 %s43, 1
        %s185 = scalar_lea.sflag [#allocation5], %s184
        %s186 = sand.u32 %s43, 1
        %s187 = smul.addr %s186, 4
        %s188 = scalar_lea.vmem [#allocation4], %s187
        // Predicated region
        $region33: #{tpu_custom_call.1} parent=31 // pred_check
          %p189 = pneg %p56
        $region34: #{tpu_custom_call.1} parent=31 // pred_check_branch
          %191 = sbr.rel (%p189) target = $region36
        $region35: #{tpu_custom_call.1} parent=31 // pred_region
          %192 = dma.done %s185, 64
        $region36: #{tpu_custom_call.1} parent=31 // pred_fallthru
          _
        // Predicated region
        $region37: #{tpu_custom_call.1} parent=31 // pred_check
          %p193 = pneg %p77
        $region38: #{tpu_custom_call.1} parent=31 // pred_check_branch
          %195 = sbr.rel (%p193) target = $region40
        $region39: #{tpu_custom_call.1} parent=31 // pred_region
          %196 = dma.done [#allocation8], 64
        $region40: #{tpu_custom_call.1} parent=31 // pred_fallthru
          _
        %s197 = sand.u32 %s43, 1
        %s198 = scalar_lea.sflag [#allocation5], %s197
        %s199 = sand.u32 %s43, 1
        %s200 = smul.addr %s199, 4
        %s201 = scalar_lea.vmem [#allocation4], %s200
        %p202 = pneg %p56
        %p203 = pneg %p53
        %p204 = pneg %p77
        %p205 = pneg %p74
        %p206 = pneg %p98
        %p207 = pneg %p95
        %p208 = pneg %p124
        %p209 = pneg %p121
        %s210 = sand.u32 %s111, 1
        %s211 = scalar_lea.sflag [#allocation6], %s210
        %s212 = sand.u32 %s111, 1
        %s213 = scalar_lea.vmem [#allocation9], %s212
        %p215 = scmp.eq.s32.totalorder %s26, 0
        // Predicated region
        $region41: #{tpu_custom_call.1} parent=31 // pred_check
          %p216 = pneg %p215
        $region42: #{tpu_custom_call.1} parent=31 // pred_check_branch
          %218 = sbr.rel (%p216) target = $region44
        $region43: #{tpu_custom_call.1} parent=31 // pred_region
          %219 = vst [vmem:[#allocation2] sm:$0xff] 0.0
          %220 = vst [vmem:[#allocation3] sm:$0xff] -inf
        $region44: #{tpu_custom_call.1} parent=31 // pred_fallthru
          _
        %v221 = vld [vmem:[#allocation7] sm:$0xf]
        %v222 = vld [vmem:[%s2] sm:$0x1]
        %v223 = vld [vmem:[%s188] sm:$0xf]
        %v225 = vlaneseq
        %v226 = vshrl.u32 %v225, 7
        %v227 = vsub.s32 0, %v226
        %v228 = vrot.slane %v222, %v227
        %230 = vxpose.xlu0.c.b16.start [1/8] %v223, 128
        %231 = vxpose.xlu0.c.b16.cont [2/8] 0, 128
        %232 = vxpose.xlu0.c.b16.cont [3/8] 0, 128
        %233 = vxpose.xlu0.c.b16.cont [4/8] 0, 128
        %234 = vxpose.xlu0.c.b16.cont [5/8] 0, 128
        %235 = vxpose.xlu0.c.b16.cont [6/8] 0, 128
        %236 = vxpose.xlu0.c.b16.cont [7/8] 0, 128
        %237 = vxpose.xlu0.c.b16.end [8/8] 0, 128
        %v238 = vpop.trf.xlu0
        %v239 = vpop.trf.xlu0
        %v240 = vpop.trf.xlu0
        %v241 = vpop.trf.xlu0
        %v242 = vpop.trf.xlu0
        %v243 = vpop.trf.xlu0
        %v244 = vpop.trf.xlu0
        %v245 = vpop.trf.xlu0
        %vm246 = vcmask 64512
        %v248 = vsel %vm246, %v238, 0
        %v251 = vsel %vm246, %v239, 0
        %v254 = vsel %vm246, %v240, 0
        %v257 = vsel %vm246, %v241, 0
        %v260 = vsel %vm246, %v242, 0
        %v263 = vsel %vm246, %v243, 0
        %v266 = vsel %vm246, %v244, 0
        %v269 = vsel %vm246, %v245, 0
        %vm271 = vcmask 1043456
        %v273 = vsel %vm271, %v221, 0
        %275 = vmatprep.subr.bf16.mxu0 0
        %276 = vmatpush1.bf16.msra.mxu0 %v273
        %277 = vmatprep.subr.bf16.mxu0 0
        %278 = vmatpush1.bf16.msra.mxu0 0
        %279 = vmatprep.subr.bf16.mxu0 0
        %280 = vmatpush1.bf16.msra.mxu0 0
        %281 = vmatprep.subr.bf16.mxu0 0
        %282 = vmatpush1.bf16.msra.mxu0 0
        %283 = vmatprep.subr.bf16.mxu0 0
        %284 = vmatpush1.bf16.msra.mxu0 0
        %285 = vmatprep.subr.bf16.mxu0 0
        %286 = vmatpush1.bf16.msra.mxu0 0
        %287 = vmatprep.subr.bf16.mxu0 0
        %288 = vmatpush1.bf16.msra.mxu0 0
        %289 = vmatprep.subr.bf16.mxu0 0
        %290 = vmatpush1.bf16.msra.mxu0 0
        %291 = vmatprep.subr.bf16.mxu0 0
        %292 = vmatpush1.bf16.msra.mxu0 0
        %293 = vmatprep.subr.bf16.mxu0 0
        %294 = vmatpush1.bf16.msra.mxu0 0
        %295 = vmatprep.subr.bf16.mxu0 0
        %296 = vmatpush1.bf16.msra.mxu0 0
        %297 = vmatprep.subr.bf16.mxu0 0
        %298 = vmatpush1.bf16.msra.mxu0 0
        %299 = vmatprep.subr.bf16.mxu0 0
        %300 = vmatpush1.bf16.msra.mxu0 0
        %301 = vmatprep.subr.bf16.mxu0 0
        %302 = vmatpush1.bf16.msra.mxu0 0
        %303 = vmatprep.subr.bf16.mxu0 0
        %304 = vmatpush1.bf16.msra.mxu0 0
        %305 = vmatprep.subr.bf16.mxu0 0
        %306 = vmatpush1.bf16.msra.mxu0 0
        %307 = vmatprep.mubr.bf16.mxu0 0
        %308 = vmatmul.mubr.bf16.gmra.mrb[0].mxu0 %v248
        %v309 = vpop.f32.mrb[0].mxu0
        %v310 = vadd.f32 %v228, %v309
        %v311 = vpop.f32.mrb[0].mxu0
        %v312 = vpop.f32.mrb[0].mxu0
        %v313 = vadd.f32 %v228, %v312
        %v314 = vpop.f32.mrb[0].mxu0
        %315 = vmatprep.mubr.bf16.mxu0 0
        %316 = vmatmul.mubr.bf16.gmra.mrb[0].mxu0 %v251
        %v317 = vpop.f32.mrb[0].mxu0
        %v318 = vadd.f32 %v228, %v317
        %v319 = vpop.f32.mrb[0].mxu0
        %v320 = vpop.f32.mrb[0].mxu0
        %v321 = vadd.f32 %v228, %v320
        %v322 = vpop.f32.mrb[0].mxu0
        %323 = vmatprep.mubr.bf16.mxu0 0
        %324 = vmatmul.mubr.bf16.gmra.mrb[0].mxu0 %v254
        %v325 = vpop.f32.mrb[0].mxu0
        %v326 = vadd.f32 %v228, %v325
        %v327 = vpop.f32.mrb[0].mxu0
        %v328 = vpop.f32.mrb[0].mxu0
        %v329 = vadd.f32 %v228, %v328
        %v330 = vpop.f32.mrb[0].mxu0
        %331 = vmatprep.mubr.bf16.mxu0 0
        %332 = vmatmul.mubr.bf16.gmra.mrb[0].mxu0 %v257
        %v333 = vpop.f32.mrb[0].mxu0
        %v334 = vadd.f32 %v228, %v333
        %v335 = vpop.f32.mrb[0].mxu0
        %v336 = vpop.f32.mrb[0].mxu0
        %v337 = vadd.f32 %v228, %v336
        %v338 = vpop.f32.mrb[0].mxu0
        %339 = vmatprep.mubr.bf16.mxu0 0
        %340 = vmatmul.mubr.bf16.gmra.mrb[0].mxu0 %v260
        %v341 = vpop.f32.mrb[0].mxu0
        %v342 = vadd.f32 %v228, %v341
        %v343 = vpop.f32.mrb[0].mxu0
        %v344 = vpop.f32.mrb[0].mxu0
        %v345 = vadd.f32 %v228, %v344
        %v346 = vpop.f32.mrb[0].mxu0
        %347 = vmatprep.mubr.bf16.mxu0 0
        %348 = vmatmul.mubr.bf16.gmra.mrb[0].mxu0 %v263
        %v349 = vpop.f32.mrb[0].mxu0
        %v350 = vadd.f32 %v228, %v349
        %v351 = vpop.f32.mrb[0].mxu0
        %v352 = vpop.f32.mrb[0].mxu0
        %v353 = vadd.f32 %v228, %v352
        %v354 = vpop.f32.mrb[0].mxu0
        %355 = vmatprep.mubr.bf16.mxu0 0
        %356 = vmatmul.mubr.bf16.gmra.mrb[0].mxu0 %v266
        %v357 = vpop.f32.mrb[0].mxu0
        %v358 = vadd.f32 %v228, %v357
        %v359 = vpop.f32.mrb[0].mxu0
        %v360 = vpop.f32.mrb[0].mxu0
        %v361 = vadd.f32 %v228, %v360
        %v362 = vpop.f32.mrb[0].mxu0
        %363 = vmatprep.mubr.bf16.mxu0 0
        %364 = vmatmul.mubr.bf16.gmra.mrb[0].mxu0 %v269
        %v365 = vpop.f32.mrb[0].mxu0
        %v366 = vadd.f32 %v228, %v365
        %v367 = vpop.f32.mrb[0].mxu0
        %v368 = vpop.f32.mrb[0].mxu0
        %v369 = vadd.f32 %v228, %v368
        %v370 = vpop.f32.mrb[0].mxu0
        %371 = vdwg.mxu0
        %v372 = vmul.f32 %v310, %v310
        %v373 = vmul.f32 %v313, %v313
        %v374 = vmul.f32 %v318, %v318
        %v375 = vmul.f32 %v321, %v321
        %v376 = vmul.f32 %v326, %v326
        %v377 = vmul.f32 %v329, %v329
        %v378 = vmul.f32 %v334, %v334
        %v379 = vmul.f32 %v337, %v337
        %v380 = vmul.f32 %v342, %v342
        %v381 = vmul.f32 %v345, %v345
        %v382 = vmul.f32 %v350, %v350
        %v383 = vmul.f32 %v353, %v353
        %v384 = vmul.f32 %v358, %v358
        %v385 = vmul.f32 %v361, %v361
        %v386 = vmul.f32 %v366, %v366
        %v387 = vmul.f32 %v369, %v369
        %v388 = vmul.f32 %v310, %v372
        %v389 = vmul.f32 %v313, %v373
        %v390 = vmul.f32 %v318, %v374
        %v391 = vmul.f32 %v321, %v375
        %v392 = vmul.f32 %v326, %v376
        %v393 = vmul.f32 %v329, %v377
        %v394 = vmul.f32 %v334, %v378
        %v395 = vmul.f32 %v337, %v379
        %v396 = vmul.f32 %v342, %v380
        %v397 = vmul.f32 %v345, %v381
        %v398 = vmul.f32 %v350, %v382
        %v399 = vmul.f32 %v353, %v383
        %v400 = vmul.f32 %v358, %v384
        %v401 = vmul.f32 %v361, %v385
        %v402 = vmul.f32 %v366, %v386
        %v403 = vmul.f32 %v369, %v387
        %v404 = vmul.f32 %v388, 0.044715
        %v405 = vmul.f32 %v389, 0.044715
        %v406 = vmul.f32 %v390, 0.044715
        %v407 = vmul.f32 %v391, 0.044715
        %v408 = vmul.f32 %v392, 0.044715
        %v409 = vmul.f32 %v393, 0.044715
        %v410 = vmul.f32 %v394, 0.044715
        %v411 = vmul.f32 %v395, 0.044715
        %v412 = vmul.f32 %v396, 0.044715
        %v413 = vmul.f32 %v397, 0.044715
        %v414 = vmul.f32 %v398, 0.044715
        %v415 = vmul.f32 %v399, 0.044715
        %v416 = vmul.f32 %v400, 0.044715
        %v417 = vmul.f32 %v401, 0.044715
        %v418 = vmul.f32 %v402, 0.044715
        %v419 = vmul.f32 %v403, 0.044715
        %v420 = vadd.f32 %v310, %v404
        %v421 = vadd.f32 %v313, %v405
        %v422 = vadd.f32 %v318, %v406
        %v423 = vadd.f32 %v321, %v407
        %v424 = vadd.f32 %v326, %v408
        %v425 = vadd.f32 %v329, %v409
        %v426 = vadd.f32 %v334, %v410
        %v427 = vadd.f32 %v337, %v411
        %v428 = vadd.f32 %v342, %v412
        %v429 = vadd.f32 %v345, %v413
        %v430 = vadd.f32 %v350, %v414
        %v431 = vadd.f32 %v353, %v415
        %v432 = vadd.f32 %v358, %v416
        %v433 = vadd.f32 %v361, %v417
        %v434 = vadd.f32 %v366, %v418
        %v435 = vadd.f32 %v369, %v419
        %v436 = vmul.f32 %v420, 0.7978846
        %v437 = vmul.f32 %v421, 0.7978846
        %v438 = vmul.f32 %v422, 0.7978846
        %v439 = vmul.f32 %v423, 0.7978846
        %v440 = vmul.f32 %v424, 0.7978846
        %v441 = vmul.f32 %v425, 0.7978846
        %v442 = vmul.f32 %v426, 0.7978846
        %v443 = vmul.f32 %v427, 0.7978846
        %v444 = vmul.f32 %v428, 0.7978846
        %v445 = vmul.f32 %v429, 0.7978846
        %v446 = vmul.f32 %v430, 0.7978846
        %v447 = vmul.f32 %v431, 0.7978846
        %v448 = vmul.f32 %v432, 0.7978846
        %v449 = vmul.f32 %v433, 0.7978846
        %v450 = vmul.f32 %v434, 0.7978846
        %v451 = vmul.f32 %v435, 0.7978846
        %v452 = vtanh.pop %v436
        %v453 = vtanh.pop %v437
        %v454 = vtanh.pop %v438
        %v455 = vtanh.pop %v439
        %v456 = vtanh.pop %v440
        %v457 = vtanh.pop %v441
        %v458 = vtanh.pop %v442
        %v459 = vtanh.pop %v443
        %v460 = vtanh.pop %v444
        %v461 = vtanh.pop %v445
        %v462 = vtanh.pop %v446
        %v463 = vtanh.pop %v447
        %v464 = vtanh.pop %v448
        %v465 = vtanh.pop %v449
        %v466 = vtanh.pop %v450
        %v467 = vtanh.pop %v451
        %v468 = vadd.f32 %v452, 1.0
        %v469 = vadd.f32 %v453, 1.0
        %v470 = vadd.f32 %v454, 1.0
        %v471 = vadd.f32 %v455, 1.0
        %v472 = vadd.f32 %v456, 1.0
        %v473 = vadd.f32 %v457, 1.0
        %v474 = vadd.f32 %v458, 1.0
        %v475 = vadd.f32 %v459, 1.0
        %v476 = vadd.f32 %v460, 1.0
        %v477 = vadd.f32 %v461, 1.0
        %v478 = vadd.f32 %v462, 1.0
        %v479 = vadd.f32 %v463, 1.0
        %v480 = vadd.f32 %v464, 1.0
        %v481 = vadd.f32 %v465, 1.0
        %v482 = vadd.f32 %v466, 1.0
        %v483 = vadd.f32 %v467, 1.0
        %v484 = vmul.f32 %v468, 0.5
        %v485 = vmul.f32 %v469, 0.5
        %v486 = vmul.f32 %v470, 0.5
        %v487 = vmul.f32 %v471, 0.5
        %v488 = vmul.f32 %v472, 0.5
        %v489 = vmul.f32 %v473, 0.5
        %v490 = vmul.f32 %v474, 0.5
        %v491 = vmul.f32 %v475, 0.5
        %v492 = vmul.f32 %v476, 0.5
        %v493 = vmul.f32 %v477, 0.5
        %v494 = vmul.f32 %v478, 0.5
        %v495 = vmul.f32 %v479, 0.5
        %v496 = vmul.f32 %v480, 0.5
        %v497 = vmul.f32 %v481, 0.5
        %v498 = vmul.f32 %v482, 0.5
        %v499 = vmul.f32 %v483, 0.5
        %v500 = vmul.f32 %v310, %v484
        %v501 = vmul.f32 %v313, %v485
        %v502 = vmul.f32 %v318, %v486
        %v503 = vmul.f32 %v321, %v487
        %v504 = vmul.f32 %v326, %v488
        %v505 = vmul.f32 %v329, %v489
        %v506 = vmul.f32 %v334, %v490
        %v507 = vmul.f32 %v337, %v491
        %v508 = vmul.f32 %v342, %v492
        %v509 = vmul.f32 %v345, %v493
        %v510 = vmul.f32 %v350, %v494
        %v511 = vmul.f32 %v353, %v495
        %v512 = vmul.f32 %v358, %v496
        %v513 = vmul.f32 %v361, %v497
        %v514 = vmul.f32 %v366, %v498
        %v515 = vmul.f32 %v369, %v499
        %v516 = vadd.f32 %v500, %v501
        %v517 = vadd.f32 %v516, %v502
        %v518 = vadd.f32 %v517, %v503
        %v519 = vadd.f32 %v518, %v504
        %v520 = vadd.f32 %v519, %v505
        %v521 = vadd.f32 %v520, %v506
        %v522 = vadd.f32 %v521, %v507
        %v523 = vadd.f32 %v522, %v508
        %v524 = vadd.f32 %v523, %v509
        %v525 = vadd.f32 %v524, %v510
        %v526 = vadd.f32 %v525, %v511
        %v527 = vadd.f32 %v526, %v512
        %v528 = vadd.f32 %v527, %v513
        %v529 = vadd.f32 %v528, %v514
        %v530 = vadd.f32 %v529, %v515
        %v531 = vmax.f32 %v500, %v504
        %v532 = vmax.f32 %v501, %v505
        %v533 = vmax.f32 %v502, %v506
        %v534 = vmax.f32 %v503, %v507
        %v535 = vmax.f32 %v531, %v508
        %v536 = vmax.f32 %v532, %v509
        %v537 = vmax.f32 %v533, %v510
        %v538 = vmax.f32 %v534, %v511
        %v539 = vmax.f32 %v535, %v512
        %v540 = vmax.f32 %v536, %v513
        %v541 = vmax.f32 %v537, %v514
        %v542 = vmax.f32 %v538, %v515
        %v543 = vmax.f32 %v539, %v540
        %v544 = vmax.f32 %v541, %v542
        %v545 = vmax.f32 %v543, %v544
        %v546 = vld [vmem:[#allocation2] sm:$0xff]
        %v547 = vadd.f32 %v546, %v530
        %548 = vst [vmem:[#allocation2] sm:$0xff] %v547
        %v549 = vld [vmem:[#allocation3] sm:$0xff]
        %v550 = vmax.f32 %v549, %v545
        %551 = vst [vmem:[#allocation3] sm:$0xff] %v550
        %p552 = scmp.eq.s32.totalorder %s26, 1
        // Predicated region
        $region45: #{tpu_custom_call.1} parent=31 // pred_check
          %p553 = pneg %p552
        $region46: #{tpu_custom_call.1} parent=31 // pred_check_branch
          %555 = sbr.rel (%p553) target = $region48
        $region47: #{tpu_custom_call.1} parent=31 // pred_region
          %v556 = vld [vmem:[#allocation2] sm:$0xff]
          %v557 = vrot.slane %v556, 4
          %v558 = vadd.f32 %v556, %v557
          %v559 = vrot.slane %v558, 2
          %v560 = vadd.f32 %v558, %v559
          %v561 = vrot.slane %v560, 1
          %v562 = vadd.f32 %v560, %v561
          %v563 = vld [vmem:[#allocation3] sm:$0xff]
          %v564 = vrot.slane %v563, 4
          %v565 = vmax.f32 %v563, %v564
          %v566 = vrot.slane %v565, 2
          %v567 = vmax.f32 %v565, %v566
          %v568 = vrot.slane %v567, 1
          %v569 = vmax.f32 %v567, %v568
          %v570 = vmul.f32 %v562, 0.00390625
          %v571 = vadd.f32 %v570, %v569
          %572 = vst [vmem:[%s213] sm:$0x1] %v571
        $region48: #{tpu_custom_call.1} parent=31 // pred_fallthru
          _
        %s573 = sand.u32 %s111, 1
        %s574 = scalar_lea.sflag [#allocation6], %s573
        %s575 = sand.u32 %s111, 1
        %s576 = scalar_lea.vmem [#allocation9], %s575
        // Predicated region
        $region49: #{tpu_custom_call.1} parent=31 // pred_check
          %p577 = pneg %p121
        $region50: #{tpu_custom_call.1} parent=31 // pred_check_branch
          %579 = sbr.rel (%p577) target = $region52
        $region51: #{tpu_custom_call.1} parent=31 // pred_region
          %s581 = ssub.s32 16, 16
          %582 = vsyncadd %s574, %s581
          %s583 = smul.addr %s25, 16
          %s584 = scalar_lea.hbm %s3, %s583
          %s586 = sshll.u32 %s576, 4
          %s587 = int_to_ptr.vmem [resolvable:$true] %s586
          %589 = dma.vmem_to_hbm [thread:$0]  %s587, 16, %s584, %s574
        $region52: #{tpu_custom_call.1} parent=31 // pred_fallthru
          _
      $region32: #{tpu_custom_call.1} parent=5 // pred_fallthru
        _
      %p590 = scmp.le.s32.totalorder 2, %s16
      // Predicated region
      $region53: #{tpu_custom_call.1} parent=5 // pred_check
        %p591 = pneg %p590
      $region54: #{tpu_custom_call.1} parent=5 // pred_check_branch
        %593 = sbr.rel (%p591) target = $region56
      $region55: #{tpu_custom_call.1} parent=5 // pred_region
        %s594 = ssub.s32 %s16, 2
        // Predicated region
        $region57: #{tpu_custom_call.1} parent=55 // pred_check
          %p595 = pneg %p127
        $region58: #{tpu_custom_call.1} parent=55 // pred_check_branch
          %597 = sbr.rel (%p595) target = $region60
        $region59: #{tpu_custom_call.1} parent=55 // pred_region
          %s598 = sand.u32 %s112, 1
          %s599 = scalar_lea.sflag [#allocation6], %s598
          %s600 = sand.u32 %s112, 1
          %s601 = scalar_lea.vmem [#allocation9], %s600
          %602 = dma.done %s599, 16
        $region60: #{tpu_custom_call.1} parent=55 // pred_fallthru
          _
      $region56: #{tpu_custom_call.1} parent=5 // pred_fallthru
        _
    $region6: #{tpu_custom_call.1} parent=1 // loop_footer
      %s20 = sadd.s32 1, %s16
    $region7: #{tpu_custom_call.1} parent=1 // loop_footer_branch
      %15 = sbr.rel target = $region3
    $region8: #{tpu_custom_call.1} parent=1 // loop_exit
      _
    %603 = vsyncpa [#allocation5], 1
    %s604 = scalar_lea.sflag [#allocation5], 1
    %605 = vsyncpa %s604, 1
    %606 = vsyncpa [#allocation8], 1
    %607 = vsyncpa [#allocation6], 1
    %s608 = scalar_lea.sflag [#allocation6], 1
    %609 = vsyncpa %s608, 1

</llo_original>
